<compile_context>
chip_gen: v7x
topology: tpu7x:2x2x1
jax: 0.10.0
libtpu: 0.0.40
codegen_flags: <defaults>
</compile_context>

<pallas_src>
import math

import jax
import jax.numpy as jnp
from jax.experimental import pallas as pl
from jax.experimental.pallas import tpu as pltpu


# Per-block byte target for EACH of the x and out blocks, measured in
# lane/sublane-padded bytes.  Double-buffered that is ~2*(2+2)=8 MiB of live
# VMEM: safe under v5e's 16 MiB scoped default, v6e/v7x's 32 MiB scoped
# default, and v7x's 64 MiB physical VMEM.
_BLOCK_TARGET_BYTES = 2 * 1024 * 1024

# Below this total traffic (read + write bytes) the pallas_call fixed cost plus
# ~0.35 us per grid step dwarfs the add; let XLA fuse a plain `x + bias`.
_DEFAULT_MIN_PALLAS_BYTES = 1 << 20


def _round_up(n, m):
    return ((n + m - 1) // m) * m


def _add_bias_kernel(x_ref, b_ref, o_ref):
    # Broadcast add on the VPU; explicit cast so mixed dtypes
    # (e.g. bf16 x + f32 bias -> f32 out) store cleanly.
    o_ref[...] = (x_ref[...] + b_ref[...]).astype(o_ref.dtype)


# ---------------- generic row x lane tiled runner: (R, L) + (1, L) ----------------
def _run_rows(x2, bias_row, out_dtype):
    R, L = x2.shape
    itemsize = max(x2.dtype.itemsize, jnp.dtype(out_dtype).itemsize)
    lane_pad = _round_up(L, 128)

    # Lane tile: full extent if an 8-row slab fits the budget, else a
    # 128-multiple slab (only kicks in for very wide rows).
    if 8 * lane_pad * itemsize <= _BLOCK_TARGET_BYTES:
        tl = L
        tl_pad = lane_pad
    else:
        tl = max(128, (_BLOCK_TARGET_BYTES // (8 * itemsize)) // 128 * 128)
        tl = min(tl, (L // 128) * 128)
        tl_pad = tl

    # Row tile: multiple of 8 (or full extent) sized from padded bytes.
    rows_budget = max(1, _BLOCK_TARGET_BYTES // (tl_pad * itemsize))
    if rows_budget >= R:
        tr = R
    else:
        tr = min(R, max(8, (rows_budget // 8) * 8))

    # v7x has 2 TensorCores sharing HBM bandwidth: guarantee >= 2 grid steps on
    # a "parallel" axis when everything would otherwise land in a single block.
    # (Neutral on single-TC v5e/v6e.)
    if tr == R and tl == L and R >= 16:
        tr = min(R, _round_up((R + 1) // 2, 8))

    grid = (pl.cdiv(R, tr), pl.cdiv(L, tl))
    bytes_accessed = (x2.size * x2.dtype.itemsize
                      + bias_row.size * bias_row.dtype.itemsize
                      + R * L * jnp.dtype(out_dtype).itemsize)

    return pl.pallas_call(
        _add_bias_kernel,
        out_shape=jax.ShapeDtypeStruct((R, L), out_dtype),
        grid=grid,
        in_specs=[
            pl.BlockSpec((tr, tl), lambda i, j: (i, j)),
            pl.BlockSpec((1, tl), lambda i, j: (0, j)),   # bias resident across row steps
        ],
        out_specs=pl.BlockSpec((tr, tl), lambda i, j: (i, j)),
        compiler_params=pltpu.CompilerParams(
            dimension_semantics=("parallel", "parallel"),
        ),
        cost_estimate=pl.CostEstimate(
            flops=R * L, transcendentals=0, bytes_accessed=bytes_accessed),
    )(x2, bias_row)


def _add_bias_rows_dense(x2, bias_row, out_dtype):
    """(R, L) + (1, L) with an optional fold of rows into the lane axis when L
    is not a multiple of 128 (restores full-width DMAs / unmasked stores)."""
    R, L = x2.shape
    if L % 128 != 0:
        g = 128 // math.gcd(L, 128)
        if 1 < g <= R and R % g == 0:
            x_fold = x2.reshape(R // g, g * L)          # row-major merge: layout no-op
            bias_fold = jnp.tile(bias_row, (1, g))      # (1, g*L), tiny
            y = _run_rows(x_fold, bias_fold, out_dtype)
            return y.reshape(R, L)
        # (Could pad R up to a multiple of g here; padding costs a full extra
        #  HBM copy, so we just accept lane padding for this rare case.)
    return _run_rows(x2, bias_row, out_dtype)


# ---------------- 2-D case: x (B, C) + bias (1, C) ----------------
def _add_bias_2d(x, bias_col, min_pallas_bytes):
    B, C = x.shape
    out_dtype = jnp.result_type(x.dtype, bias_col.dtype)
    bias_row = bias_col.reshape(1, C)

    traffic = x.size * (x.dtype.itemsize + jnp.dtype(out_dtype).itemsize)
    if traffic < min_pallas_bytes:
        return x + bias_row                      # tiny: fused XLA add wins

    return _add_bias_rows_dense(x, bias_row, out_dtype)


# ------------- 4-D case: x (B, C, H, W) + bias (1, C, 1, 1) -------------
def _add_bias_4d(x, bias_col, min_pallas_bytes):
    B, C, H, W = x.shape
    HW = H * W
    out_dtype = jnp.result_type(x.dtype, bias_col.dtype)

    traffic = x.size * (x.dtype.itemsize + jnp.dtype(out_dtype).itemsize)
    if traffic < min_pallas_bytes:
        return x + bias_col.reshape(1, C, 1, 1)  # tiny: fused XLA add wins

    bias_flat = bias_col.reshape(C)

    if HW % 128 != 0:
        # Lane-sparse spatial (e.g. 7x7 maps): flatten channels*spatial into the
        # lane axis and pre-expand the bias once, then reuse the generic dense
        # 2-D runner (which handles further folding / lane tiling).
        x2 = x.reshape(B, C * HW)                               # NCHW flatten: layout no-op
        bias_row = jnp.repeat(bias_flat, HW).reshape(1, C * HW)
        y = _add_bias_rows_dense(x2, bias_row, out_dtype)
        return y.reshape(B, C, H, W)

    # Lane-aligned spatial: (bt, ct, hwt) blocks with a (1, ct, 1) bias slab
    # broadcast on the VPU (no per-channel 1-element bias DMAs).
    x3 = x.reshape(B, C, HW)
    bias3 = bias_flat.reshape(1, C, 1)
    itemsize = max(x.dtype.itemsize, jnp.dtype(out_dtype).itemsize)

    if 8 * HW * itemsize <= _BLOCK_TARGET_BYTES:
        hwt = HW
    else:
        hwt = max(128, (_BLOCK_TARGET_BYTES // (8 * itemsize)) // 128 * 128)
        hwt = min(hwt, HW)

    rows_budget = max(1, _BLOCK_TARGET_BYTES // (hwt * itemsize))
    if rows_budget >= C:
        ct = C
    else:
        ct = min(C, max(8, (rows_budget // 8) * 8))

    if ct == C and hwt == HW:
        bt = max(1, min(B, _BLOCK_TARGET_BYTES // max(1, C * HW * itemsize)))
    else:
        bt = 1

    # v7x: keep >= 2 grid steps when the whole problem fits in one block.
    if bt == B and ct == C and hwt == HW and B >= 2:
        bt = (B + 1) // 2

    grid = (pl.cdiv(B, bt), pl.cdiv(C, ct), pl.cdiv(HW, hwt))
    bytes_accessed = (x.size * x.dtype.itemsize
                      + C * bias_flat.dtype.itemsize
                      + x.size * jnp.dtype(out_dtype).itemsize)

    y3 = pl.pallas_call(
        _add_bias_kernel,
        out_shape=jax.ShapeDtypeStruct((B, C, HW), out_dtype),
        grid=grid,
        in_specs=[
            pl.BlockSpec((bt, ct, hwt), lambda b, c, s: (b, c, s)),
            pl.BlockSpec((1, ct, 1), lambda b, c, s: (0, c, 0)),
        ],
        out_specs=pl.BlockSpec((bt, ct, hwt), lambda b, c, s: (b, c, s)),
        compiler_params=pltpu.CompilerParams(
            dimension_semantics=("parallel", "parallel", "parallel"),
        ),
        cost_estimate=pl.CostEstimate(
            flops=x.size, transcendentals=0, bytes_accessed=bytes_accessed),
    )(x3, bias3)
    return y3.reshape(B, C, H, W)


class AddBias:
    """JAX/Pallas port of the PyTorch AddBias module."""

    def __init__(self, bias, min_pallas_bytes=_DEFAULT_MIN_PALLAS_BYTES):
        # mirror nn.Parameter(bias.unsqueeze(1)) -> shape (C, 1)
        self._bias = jnp.asarray(bias).reshape(-1, 1)
        self._min_pallas_bytes = min_pallas_bytes

    def __call__(self, x):
        if x.ndim == 2:
            return _add_bias_2d(x, self._bias, self._min_pallas_bytes)
        return _add_bias_4d(x, self._bias, self._min_pallas_bytes)


if __name__ == "__main__":
    key = jax.random.PRNGKey(0)
    k_bias, k_x4, k_x2, k_x7 = jax.random.split(key, 4)

    B, C, H, W = 2, 4, 16, 16
    bias = jax.random.normal(k_bias, (C,), dtype=jnp.float32)

    # min_pallas_bytes=0 forces the Pallas kernels at these small demo shapes;
    # the default-threshold module routes tiny inputs to the fused XLA add.
    module = AddBias(bias, min_pallas_bytes=0)
    module_auto = AddBias(bias)

    # 4-D path, lane-aligned spatial (16*16 = 256 is a multiple of 128).
    x4 = jax.random.normal(k_x4, (B, C, H, W), dtype=jnp.float32)
    y4 = jax.block_until_ready(module(x4))
    ref4 = x4 + bias.reshape(1, C, 1, 1)
    assert y4.shape == x4.shape
    assert y4.dtype == jnp.result_type(x4.dtype, bias.dtype)
    assert jnp.allclose(y4, ref4, atol=1e-6), "4D mismatch"
    assert jnp.allclose(module_auto(x4), ref4, atol=1e-6), "4D fallback mismatch"

    # 4-D path, lane-sparse spatial (7*7 = 49) -> flattened lane-dense route.
    x7 = jax.random.normal(k_x7, (B, C, 7, 7), dtype=jnp.float32)
    y7 = jax.block_until_ready(module(x7))
    assert jnp.allclose(y7, x7 + bias.reshape(1, C, 1, 1), atol=1e-6), "4D(7x7) mismatch"

    # 2-D path (action logits / diag-gaussian std path).
    x2 = jax.random.normal(k_x2, (B, C), dtype=jnp.float32)
    y2 = jax.block_until_ready(module(x2))
    ref2 = x2 + bias.reshape(1, C)
    assert y2.shape == x2.shape
    assert jnp.allclose(y2, ref2, atol=1e-6), "2D mismatch"
    assert jnp.allclose(module_auto(x2), ref2, atol=1e-6), "2D fallback mismatch"

    # Larger 2-D batch whose row count is a multiple of the fold factor, so the
    # lane-densified (row-folded) path is also exercised.
    xb = jax.random.normal(k_x2, (256, C), dtype=jnp.float32)
    yb = jax.block_until_ready(module(xb))
    assert jnp.allclose(yb, xb + bias.reshape(1, C), atol=1e-6), "folded 2D mismatch"

    print("KERNEL_OK")
</pallas_src>

<mosaic_0001>
module attributes {stable_mosaic.version = 11 : i64} {
  func.func @_add_bias_kernel(%arg0: i32, %arg1: i32, %arg2: i32, %arg3: memref<1x4x256xf32, #tpu.memory_space<vmem>>, %arg4: memref<1x4x1xf32, #tpu.memory_space<vmem>>, %arg5: memref<1x4x256xf32, #tpu.memory_space<vmem>>) attributes {dimension_semantics = [#tpu.dimension_semantics<parallel>, #tpu.dimension_semantics<parallel>, #tpu.dimension_semantics<parallel>], iteration_bounds = array<i64: 2, 1, 1>, scalar_prefetch = 0 : i64, scratch_operands = 0 : i64, tpu.core_type = #tpu.core_type<tc>, window_params = [{transform_indices = @transform_0, window_bounds = array<i64: 1, 4, 256>}, {transform_indices = @transform_1, window_bounds = array<i64: 1, 4, 1>}, {transform_indices = @transform_2, window_bounds = array<i64: 1, 4, 256>}]} {
    %c0 = arith.constant 0 : index
    %c0_0 = arith.constant 0 : index
    %c0_1 = arith.constant 0 : index
    %0 = vector.load %arg3[%c0, %c0_0, %c0_1] : memref<1x4x256xf32, #tpu.memory_space<vmem>>, vector<1x4x256xf32>
    %c0_2 = arith.constant 0 : index
    %c0_3 = arith.constant 0 : index
    %c0_4 = arith.constant 0 : index
    %1 = vector.load %arg4[%c0_2, %c0_3, %c0_4] : memref<1x4x1xf32, #tpu.memory_space<vmem>>, vector<1x4x1xf32>
    %2 = vector.broadcast %1 : vector<1x4x1xf32> to vector<1x4x256xf32>
    %3 = arith.addf %0, %2 : vector<1x4x256xf32>
    %c0_5 = arith.constant 0 : index
    %c0_6 = arith.constant 0 : index
    %c0_7 = arith.constant 0 : index
    %4 = vector.load %arg5[%c0_5, %c0_6, %c0_7] : memref<1x4x256xf32, #tpu.memory_space<vmem>>, vector<1x4x256xf32>
    tpu.vector_store %arg5[%c0_5, %c0_6, %c0_7], %3 {strides = array<i32>} : memref<1x4x256xf32, #tpu.memory_space<vmem>>, vector<1x4x256xf32>,
    return
  }
  func.func @transform_0(%arg0: i32, %arg1: i32, %arg2: i32) -> (i32, i32, i32) {
    %c0_i32 = arith.constant 0 : i32
    return %arg0, %arg1, %arg2 : i32, i32, i32
  }
  func.func @transform_1(%arg0: i32, %arg1: i32, %arg2: i32) -> (i32, i32, i32) {
    %c0_i32 = arith.constant 0 : i32
    %c0_i32_0 = arith.constant 0 : i32
    %c0_i32_1 = arith.constant 0 : i32
    return %c0_i32, %arg1, %c0_i32_0 : i32, i32, i32
  }
  func.func @transform_2(%arg0: i32, %arg1: i32, %arg2: i32) -> (i32, i32, i32) {
    %c0_i32 = arith.constant 0 : i32
    return %arg0, %arg1, %arg2 : i32, i32, i32
  }
}

</mosaic_0001>

<llo_original>
// kernel: tpu_custom_call.1
$region0: #{tpu_custom_call.1}
  #allocation0 [shape = 'u32[]', space=smem, size = 0x4, offset = 0x4, fixed_abs, tag = 'smem constant byte address 0x4 - core index']
  #allocation1 [shape = 'u32[144,128]{1,0:T(1,128)}', space=vmem, size = 0x12000, scoped, tag = 'internal scratch']
  %s0 = inlined_call_operand.hbm [shape: f32[2,4,256], index: 0, kind: input, shape index: {}]
  %s1 = inlined_call_operand.vmem [shape: f32[1,4,1], index: 1, kind: input, shape index: {}]
  %s2 = inlined_call_operand.hbm [shape: f32[2,4,256], index: 2, kind: output, shape index: {}]
  %s3 = sld [smem:[#allocation0]]
  $region45: #{tpu_custom_call.1} parent=0
    _
  %s5 = ssub.s32 1, %s3
  %s6 = scalar_select 0, %s5, %s3
  $region1: #{tpu_custom_call.1} parent=0
    #allocation2 [shape = 'u8[8192]{0}', space=vmem, size = 0x2000, scoped, tag = 'input window, operand 0']
    #allocation3 [shape = 's32[2]{0}', space=sflag, size = 0x8, scoped, tag = 'scoped memory for tpu_custom_call.1']
    #allocation4 [shape = 's32[2]{0}', space=sflag, size = 0x8, scoped, tag = 'scoped memory for tpu_custom_call.1']
    #allocation5 [shape = 'u8[8192]{0}', space=vmem, size = 0x2000, scoped, tag = 'output window, operand 0']
    %7 = vsyncpa [#allocation3], 0
    %s8 = scalar_lea.sflag [#allocation3], 1
    %9 = vsyncpa %s8, 0
    %10 = vsyncpa [#allocation4], 0
    %s11 = scalar_lea.sflag [#allocation4], 1
    %12 = vsyncpa %s11, 0
    loop: start=0, step=1, limit=4
    $region2: #{tpu_custom_call.1} parent=1 // loop_pre_header
      _
    $region3: #{tpu_custom_call.1} parent=1 // loop_header
      %s14 = sphi 0, %s18
      %p15 = scmp.ge.s32.totalorder %s14, 4
      %s21 = sphi 0, %s40
      %s22 = sphi 0, %s36
      %s23 = sphi 0, %s32
      %s24 = sphi 0, %s21
      %s25 = sphi 0, %s22
      %s26 = sphi 0, %s23
      %s27 = sphi 0, %s24
      %s28 = sphi 0, %s25
      %s29 = sphi 0, %s26
      %s47 = sphi 0, %s49
      %s50 = sphi 0, %s47
      %s51 = sphi 0, %s50
      %s67 = sphi 0, %s51
      %s73 = sphi 0, %s75
      %s76 = sphi 0, %s73
      %s77 = sphi 0, %s76
      %s93 = sphi 0, %s77
      %s103 = sphi 0, %s105
      %s106 = sphi 0, %s103
      %s107 = sphi 0, %s106
      %s123 = sphi 0, %s107
    $region4: #{tpu_custom_call.1} parent=1 // loop_header_branch
      %17 = sbr.rel (%p15) target = $region8
    $region5: #{tpu_custom_call.1} parent=1 // loop_body
      %s19 = ssub.s32 %s14, 1
      %s20 = ssub.s32 %s14, 2
      %s30 = sadd.s32 1, %s23
      %p31 = scmp.ge.s32.totalorder %s30, 1
      %s32 = scalar_select %p31, 0, %s30
      %s33 = sadd.s32 1, %s22
      %s34 = scalar_select %p31, %s33, %s22
      %p35 = scmp.ge.s32.totalorder %s34, 1
      %s36 = scalar_select %p35, 0, %s34
      %s37 = sadd.s32 1, %s21
      %s38 = scalar_select %p35, %s37, %s21
      %p39 = scmp.ge.s32.totalorder %s38, 2
      %s40 = scalar_select %p39, 0, %s38
      %s41 = ssub.s32 %s21, %s40
      %s42 = ssub.s32 %s22, %s36
      %s43 = sor.u32 %s41, %s42
      %s44 = ssub.s32 %s23, %s32
      %s45 = sor.u32 %s43, %s44
      %p46 = scmp.eq.s32.totalorder %s45, 0
      %s48 = sadd.s32 %s47, 1
      %s49 = scalar_select %p46, %s47, %s48
      %p52 = pneg %p46
      %p53 = scmp.eq.s32.totalorder %s14, 1
      %p54 = por %p52, %p53
      %p55 = scmp.ne.s32.totalorder %s47, %s50
      %p56 = scmp.eq.s32.totalorder %s14, 0
      %p57 = por %p55, %p56
      %p58 = scmp.ne.s32.totalorder %s47, %s50
      %p59 = scmp.eq.s32.totalorder %s19, 1
      %p60 = por %p58, %p59
      %p61 = scmp.ne.s32.totalorder %s50, %s51
      %p62 = scmp.eq.s32.totalorder %s19, 0
      %p63 = por %p61, %p62
      %p64 = scmp.ne.s32.totalorder %s50, %s51
      %p65 = scmp.eq.s32.totalorder %s20, 1
      %p66 = por %p64, %p65
      %p68 = scmp.ne.s32.totalorder %s51, %s67
      %p69 = scmp.eq.s32.totalorder %s20, 0
      %p70 = por %p68, %p69
      %s71 = ssub.s32 %s22, %s36
      %p72 = scmp.eq.s32.totalorder %s71, 0
      %s74 = sadd.s32 %s73, 1
      %s75 = scalar_select %p72, %s73, %s74
      %p78 = pneg %p72
      %p79 = scmp.eq.s32.totalorder %s14, 1
      %p80 = por %p78, %p79
      %p81 = scmp.ne.s32.totalorder %s73, %s76
      %p82 = scmp.eq.s32.totalorder %s14, 0
      %p83 = por %p81, %p82
      %p84 = scmp.ne.s32.totalorder %s73, %s76
      %p85 = scmp.eq.s32.totalorder %s19, 1
      %p86 = por %p84, %p85
      %p87 = scmp.ne.s32.totalorder %s76, %s77
      %p88 = scmp.eq.s32.totalorder %s19, 0
      %p89 = por %p87, %p88
      %p90 = scmp.ne.s32.totalorder %s76, %s77
      %p91 = scmp.eq.s32.totalorder %s20, 1
      %p92 = por %p90, %p91
      %p94 = scmp.ne.s32.totalorder %s77, %s93
      %p95 = scmp.eq.s32.totalorder %s20, 0
      %p96 = por %p94, %p95
      %s97 = ssub.s32 %s21, %s40
      %s98 = ssub.s32 %s22, %s36
      %s99 = sor.u32 %s97, %s98
      %s100 = ssub.s32 %s23, %s32
      %s101 = sor.u32 %s99, %s100
      %p102 = scmp.eq.s32.totalorder %s101, 0
      %s104 = sadd.s32 %s103, 1
      %s105 = scalar_select %p102, %s103, %s104
      %p108 = pneg %p102
      %p109 = scmp.eq.s32.totalorder %s14, 1
      %p110 = por %p108, %p109
      %p111 = scmp.ne.s32.totalorder %s103, %s106
      %p112 = scmp.eq.s32.totalorder %s14, 0
      %p113 = por %p111, %p112
      %p114 = scmp.ne.s32.totalorder %s103, %s106
      %p115 = scmp.eq.s32.totalorder %s19, 1
      %p116 = por %p114, %p115
      %p117 = scmp.ne.s32.totalorder %s106, %s107
      %p118 = scmp.eq.s32.totalorder %s19, 0
      %p119 = por %p117, %p118
      %p120 = scmp.ne.s32.totalorder %s106, %s107
      %p121 = scmp.eq.s32.totalorder %s20, 1
      %p122 = por %p120, %p121
      %p124 = scmp.ne.s32.totalorder %s107, %s123
      %p125 = scmp.eq.s32.totalorder %s20, 0
      %p126 = por %p124, %p125
      %p127 = scmp.le.s32.totalorder 1, %s14
      %p128 = scmp.lt.s32.totalorder %s14, 3
      %p129 = pnand %p127, %p128
      %p130 = pneg %p129
      // Predicated region
      $region9: #{tpu_custom_call.1} parent=5 // pred_check
        _
      $region10: #{tpu_custom_call.1} parent=5 // pred_check_branch
        %132 = sbr.rel (%p129) target = $region12
      $region11: #{tpu_custom_call.1} parent=5 // pred_region
        %s133 = ssub.s32 %s14, 1
        // Predicated region
        $region13: #{tpu_custom_call.1} parent=11 // pred_check
          %p134 = pneg %p89
        $region14: #{tpu_custom_call.1} parent=11 // pred_check_branch
          %136 = sbr.rel (%p134) target = $region16
        $region15: #{tpu_custom_call.1} parent=11 // pred_region
          %p137 = scmp.lt.s32.totalorder %s25, 0
          %s138 = scalar_select %p137, %s25, 0
          %s139 = smul.addr %s138, 4
          %s140 = scalar_lea.vmem %s1, %s139
        $region16: #{tpu_custom_call.1} parent=11 // pred_fallthru
          _
      $region12: #{tpu_custom_call.1} parent=5 // pred_fallthru
        _
      %p141 = scmp.lt.s32.totalorder %s14, 2
      // Predicated region
      $region17: #{tpu_custom_call.1} parent=5 // pred_check
        %p142 = pneg %p141
      $region18: #{tpu_custom_call.1} parent=5 // pred_check_branch
        %144 = sbr.rel (%p142) target = $region20
      $region19: #{tpu_custom_call.1} parent=5 // pred_region
        // Predicated region
        $region21: #{tpu_custom_call.1} parent=19 // pred_check
          %p145 = pneg %p57
        $region22: #{tpu_custom_call.1} parent=19 // pred_check_branch
          %147 = sbr.rel (%p145) target = $region24
        $region23: #{tpu_custom_call.1} parent=19 // pred_region
          %s148 = sand.u32 %s47, 1
          %s149 = scalar_lea.sflag [#allocation3], %s148
          %s150 = sand.u32 %s47, 1
          %s151 = smul.addr %s150, 8
          %s152 = scalar_lea.vmem [#allocation2], %s151
          %s153 = smul.u32 2, %s23
          %s155 = ssub.s32 128, 128
          %156 = vsyncadd %s149, %s155
          %s157 = smul.addr %s22, 2
          %s158 = sadd.s32 %s153, %s157
          %s159 = smul.addr %s21, 2
          %s160 = sadd.s32 %s158, %s159
          %s161 = smul.addr %s160, 64
          %s162 = scalar_lea.hbm %s0, %s161
          %s164 = sshll.u32 %s152, 4
          %s165 = int_to_ptr.vmem [resolvable:$true] %s164
          %167 = dma.hbm_to_vmem [thread:$0]  %s162, 128, %s165, %s149
        $region24: #{tpu_custom_call.1} parent=19 // pred_fallthru
          _
      $region20: #{tpu_custom_call.1} parent=5 // pred_fallthru
        _
      %p168 = scmp.le.s32.totalorder 1, %s14
      %p169 = scmp.lt.s32.totalorder %s14, 3
      %p170 = pnand %p168, %p169
      %p171 = pneg %p170
      // Predicated region
      $region25: #{tpu_custom_call.1} parent=5 // pred_check
        _
      $region26: #{tpu_custom_call.1} parent=5 // pred_check_branch
        %173 = sbr.rel (%p170) target = $region28
      $region27: #{tpu_custom_call.1} parent=5 // pred_region
        %s174 = ssub.s32 %s14, 1
        %s175 = sand.u32 %s50, 1
        %s176 = scalar_lea.sflag [#allocation3], %s175
        %s177 = sand.u32 %s50, 1
        %s178 = smul.addr %s177, 8
        %s179 = scalar_lea.vmem [#allocation2], %s178
        // Predicated region
        $region29: #{tpu_custom_call.1} parent=27 // pred_check
          %p180 = pneg %p63
        $region30: #{tpu_custom_call.1} parent=27 // pred_check_branch
          %182 = sbr.rel (%p180) target = $region32
        $region31: #{tpu_custom_call.1} parent=27 // pred_region
          %183 = dma.done %s176, 128
        $region32: #{tpu_custom_call.1} parent=27 // pred_fallthru
          _
        %s184 = sand.u32 %s50, 1
        %s185 = scalar_lea.sflag [#allocation3], %s184
        %s186 = sand.u32 %s50, 1
        %s187 = smul.addr %s186, 8
        %s188 = scalar_lea.vmem [#allocation2], %s187
        %p189 = pneg %p63
        %p190 = pneg %p60
        %p191 = scmp.lt.s32.totalorder %s25, 0
        %s192 = scalar_select %p191, %s25, 0
        %s193 = smul.addr %s192, 4
        %s194 = scalar_lea.vmem %s1, %s193
        %p195 = pneg %p89
        %p196 = pneg %p86
        %p197 = pneg %p119
        %p198 = pneg %p116
        %s199 = sand.u32 %s106, 1
        %s200 = scalar_lea.sflag [#allocation4], %s199
        %s201 = sand.u32 %s106, 1
        %s202 = smul.addr %s201, 8
        %s203 = scalar_lea.vmem [#allocation5], %s202
        %s204 = smul.u32 2, %s26
        %p205 = scmp.lt.s32.totalorder %s25, 0
        %s206 = scalar_select %p205, %s25, 0
        %s207 = smul.addr %s206, 4
        %s208 = scalar_lea.vmem %s1, %s207
        %s209 = smul.u32 2, %s26
        %v210 = vld [vmem:[%s179] sm:$0xff]
        %v211 = vld [vmem:[%s208] sm:$0xf]
        %213 = vset.pattern.permute.xlu0 0
        %214 = vperm.xlu0 %213, %v211
        %v215 = vpop.permute.xlu0 %214
        %v217 = vunpack.c.l.s4 839922192
        %v218 = vunpack.c.0.s8 %v217
        %v219 = vlaneseq
        %v220 = vshrl.u32 %v219, 7
        %v221 = vsub.s32 %v218, %v220
        %v222 = vrot.slane %v215, %v221
        %v224 = vadd.f32 %v210, %v222
        %225 = vst [vmem:[%s203] sm:$0xff] %v224
        %s226 = sand.u32 %s106, 1
        %s227 = scalar_lea.sflag [#allocation4], %s226
        %s228 = sand.u32 %s106, 1
        %s229 = smul.addr %s228, 8
        %s230 = scalar_lea.vmem [#allocation5], %s229
        // Predicated region
        $region33: #{tpu_custom_call.1} parent=27 // pred_check
          %p231 = pneg %p116
        $region34: #{tpu_custom_call.1} parent=27 // pred_check_branch
          %233 = sbr.rel (%p231) target = $region36
        $region35: #{tpu_custom_call.1} parent=27 // pred_region
          %s234 = smul.u32 2, %s26
          %s236 = ssub.s32 128, 128
          %237 = vsyncadd %s227, %s236
          %s238 = smul.addr %s25, 2
          %s239 = sadd.s32 %s234, %s238
          %s240 = smul.addr %s24, 2
          %s241 = sadd.s32 %s239, %s240
          %s242 = smul.addr %s241, 64
          %s243 = scalar_lea.hbm %s2, %s242
          %s245 = sshll.u32 %s230, 4
          %s246 = int_to_ptr.vmem [resolvable:$true] %s245
          %248 = dma.vmem_to_hbm [thread:$0]  %s246, 128, %s243, %s227
        $region36: #{tpu_custom_call.1} parent=27 // pred_fallthru
          _
      $region28: #{tpu_custom_call.1} parent=5 // pred_fallthru
        _
      %p249 = scmp.le.s32.totalorder 2, %s14
      // Predicated region
      $region37: #{tpu_custom_call.1} parent=5 // pred_check
        %p250 = pneg %p249
      $region38: #{tpu_custom_call.1} parent=5 // pred_check_branch
        %252 = sbr.rel (%p250) target = $region40
      $region39: #{tpu_custom_call.1} parent=5 // pred_region
        %s253 = ssub.s32 %s14, 2
        // Predicated region
        $region41: #{tpu_custom_call.1} parent=39 // pred_check
          %p254 = pneg %p122
        $region42: #{tpu_custom_call.1} parent=39 // pred_check_branch
          %256 = sbr.rel (%p254) target = $region44
        $region43: #{tpu_custom_call.1} parent=39 // pred_region
          %s257 = sand.u32 %s107, 1
          %s258 = scalar_lea.sflag [#allocation4], %s257
          %s259 = sand.u32 %s107, 1
          %s260 = smul.addr %s259, 8
          %s261 = scalar_lea.vmem [#allocation5], %s260
          %262 = dma.done %s258, 128
        $region44: #{tpu_custom_call.1} parent=39 // pred_fallthru
          _
      $region40: #{tpu_custom_call.1} parent=5 // pred_fallthru
        _
    $region6: #{tpu_custom_call.1} parent=1 // loop_footer
      %s18 = sadd.s32 1, %s14
    $region7: #{tpu_custom_call.1} parent=1 // loop_footer_branch
      %13 = sbr.rel target = $region3
    $region8: #{tpu_custom_call.1} parent=1 // loop_exit
      _
    %263 = vsyncpa [#allocation3], 1
    %s264 = scalar_lea.sflag [#allocation3], 1
    %265 = vsyncpa %s264, 1
    %266 = vsyncpa [#allocation4], 1
    %s267 = scalar_lea.sflag [#allocation4], 1
    %268 = vsyncpa %s267, 1

</llo_original>
